<compile_context>
chip_gen: v6e
topology: v6e:2x2x1
jax: 0.10.0
libtpu: 0.0.40
codegen_flags: <defaults>
</compile_context>

<pallas_src>
import functools

import jax
import jax.numpy as jnp
from jax.experimental import pallas as pl
from jax.experimental.pallas import tpu as pltpu


def _round_up(x: int, m: int) -> int:
    return (x + m - 1) // m * m


def classifier_kernel(x_ref, w1_ref, b1_ref, w2_ref, b2_ref, o_ref):
    # out = dropout(relu(feat), training=False) -> identity dropout in eval.
    # relu commutes with the bf16 cast done in the wrapper.
    x = jnp.maximum(x_ref[...], 0)                       # bf16 (TB, 512)

    # fc1: (TB,512)@(512,128) on the MXU (bf16 in, f32 accumulate) + bias, relu
    h = jnp.dot(x, w1_ref[...], preferred_element_type=jnp.float32) + b1_ref[...]
    h = jnp.maximum(h, 0.0)
    # TODO(synk): second F.dropout defaults to training=True in PyTorch
    # (stochastic, p=0.5); modeled as identity here (eval / inference parity).

    # fc2: (TB,128)@(128,10) + bias
    logits = jnp.dot(h.astype(jnp.bfloat16), w2_ref[...],
                     preferred_element_type=jnp.float32) + b2_ref[...]

    # softmax over dim=1 (feature axis, last dim here), all in f32
    m = jnp.max(logits, axis=-1, keepdims=True)
    e = jnp.exp(logits - m)
    o_ref[...] = e * pl.reciprocal(jnp.sum(e, axis=-1, keepdims=True), approx=True)


@functools.partial(jax.jit, static_argnames=())
def classifier_forward(feat, w1, b1, w2, b2):
    B, F_IN = feat.shape
    assert F_IN == 500
    H, C = 100, 10
    F_PAD, H_PAD = 512, 128                      # lane-aligned padded dims

    # Batch tile: multiple of 8, capped at 256 (fits comfortably in the
    # 32 MiB scoped-VMEM default on v7x's 64 MiB VMEM as well as v5e/v6e).
    TB = min(256, _round_up(B, 8))
    B_pad = _round_up(B, TB)

    # Zero-pad + cast matmul operands to bf16 (zeros are inert after relu).
    x_p = jnp.zeros((B_pad, F_PAD), jnp.bfloat16).at[:B, :F_IN].set(
        feat.astype(jnp.bfloat16))
    w1_p = jnp.zeros((F_PAD, H_PAD), jnp.bfloat16).at[:F_IN, :H].set(
        w1.astype(jnp.bfloat16))
    b1_p = jnp.zeros((1, H_PAD), jnp.float32).at[:, :H].set(
        b1.reshape(1, H).astype(jnp.float32))
    w2_p = jnp.zeros((H_PAD, C), jnp.bfloat16).at[:H, :].set(
        w2.astype(jnp.bfloat16))
    b2_p = b2.reshape(1, C).astype(jnp.float32)

    grid = (B_pad // TB,)

    cost = pl.CostEstimate(
        flops=2 * B_pad * (F_PAD * H_PAD + H_PAD * C),
        transcendentals=B_pad * C,
        bytes_accessed=(2 * B_pad * F_PAD               # x (bf16)
                        + 2 * (F_PAD * H_PAD + H_PAD * C)   # weights (bf16)
                        + 4 * (H_PAD + C)                   # biases (f32)
                        + 4 * B_pad * C),                   # output (f32)
    )

    out_pad = pl.pallas_call(
        classifier_kernel,
        out_shape=jax.ShapeDtypeStruct((B_pad, C), jnp.float32),
        grid=grid,
        in_specs=[
            pl.BlockSpec((TB, F_PAD), lambda i: (i, 0)),     # x tile (pipelined)
            pl.BlockSpec((F_PAD, H_PAD), lambda i: (0, 0)),  # w1 (resident)
            pl.BlockSpec((1, H_PAD), lambda i: (0, 0)),      # b1 (resident)
            pl.BlockSpec((H_PAD, C), lambda i: (0, 0)),      # w2 (resident)
            pl.BlockSpec((1, C), lambda i: (0, 0)),          # b2 (resident)
        ],
        out_specs=pl.BlockSpec((TB, C), lambda i: (i, 0)),
        compiler_params=pltpu.CompilerParams(
            dimension_semantics=("parallel",)),              # megacore on v7x
        cost_estimate=cost,
    )(x_p, w1_p, b1_p, w2_p, b2_p)

    return out_pad[:B]


def init_params(key):
    # Deterministic init mimicking PyTorch Linear default:
    # U(-1/sqrt(fan_in), +1/sqrt(fan_in)); weights stored as (in, out).
    k1, k2, k3, k4 = jax.random.split(key, 4)
    bound1 = 1.0 / jnp.sqrt(500.0)
    bound2 = 1.0 / jnp.sqrt(100.0)
    w1 = jax.random.uniform(k1, (500, 100), jnp.float32, -bound1, bound1)
    b1 = jax.random.uniform(k2, (1, 100), jnp.float32, -bound1, bound1)
    w2 = jax.random.uniform(k3, (100, 10), jnp.float32, -bound2, bound2)
    b2 = jax.random.uniform(k4, (1, 10), jnp.float32, -bound2, bound2)
    return w1, b1, w2, b2


if __name__ == "__main__":
    key = jax.random.PRNGKey(0)
    kx, kp = jax.random.split(key)
    B = 8
    feat = jax.random.normal(kx, (B, 500), jnp.float32)
    w1, b1, w2, b2 = init_params(kp)

    out = classifier_forward(feat, w1, b1, w2, b2)
    out = jax.block_until_ready(out)
    assert out.shape == (B, 10)

    # Reference in plain JAX with the same bf16-operand / f32-accumulate path
    # (eval-mode dropout = identity).
    xb = jnp.maximum(feat, 0.0).astype(jnp.bfloat16)
    h = jnp.dot(xb, w1.astype(jnp.bfloat16),
                preferred_element_type=jnp.float32) + b1
    h = jnp.maximum(h, 0.0)
    logits = jnp.dot(h.astype(jnp.bfloat16), w2.astype(jnp.bfloat16),
                     preferred_element_type=jnp.float32) + b2
    ref = jax.nn.softmax(logits, axis=1)

    assert jnp.allclose(out, ref, atol=5e-3, rtol=1e-2), (
        f"max abs err {jnp.max(jnp.abs(out - ref))}")
    assert jnp.allclose(jnp.sum(out, axis=1), 1.0, atol=1e-2)

    print("KERNEL_OK")
</pallas_src>

<mosaic_0001>
module attributes {stable_mosaic.version = 11 : i64} {
  func.func @classifier_kernel(%arg0: i32, %arg1: memref<8x512xbf16, #tpu.memory_space<vmem>>, %arg2: memref<512x128xbf16, #tpu.memory_space<vmem>>, %arg3: memref<1x128xf32, #tpu.memory_space<vmem>>, %arg4: memref<128x10xbf16, #tpu.memory_space<vmem>>, %arg5: memref<1x10xf32, #tpu.memory_space<vmem>>, %arg6: memref<8x10xf32, #tpu.memory_space<vmem>>) attributes {dimension_semantics = [#tpu.dimension_semantics<parallel>], iteration_bounds = array<i64: 1>, scalar_prefetch = 0 : i64, scratch_operands = 0 : i64, tpu.core_type = #tpu.core_type<tc>, window_params = [{transform_indices = @transform_0, window_bounds = array<i64: 8, 512>}, {pipeline_mode = #tpu.pipeline_mode<synchronous>, transform_indices = @transform_1, window_bounds = array<i64: 512, 128>}, {pipeline_mode = #tpu.pipeline_mode<synchronous>, transform_indices = @transform_2, window_bounds = array<i64: 1, 128>}, {pipeline_mode = #tpu.pipeline_mode<synchronous>, transform_indices = @transform_3, window_bounds = array<i64: 128, 10>}, {pipeline_mode = #tpu.pipeline_mode<synchronous>, transform_indices = @transform_4, window_bounds = array<i64: 1, 10>}, {transform_indices = @transform_5, window_bounds = array<i64: 8, 10>}]} {
    %c0 = arith.constant 0 : index
    %c0_0 = arith.constant 0 : index
    %0 = vector.load %arg1[%c0, %c0_0] : memref<8x512xbf16, #tpu.memory_space<vmem>>, vector<8x512xbf16>
    %cst = arith.constant 0.000000e+00 : bf16
    %1 = vector.broadcast %cst : bf16 to vector<8x512xbf16>
    %2 = arith.maximumf %0, %1 : vector<8x512xbf16>
    %c0_1 = arith.constant 0 : index
    %c0_2 = arith.constant 0 : index
    %3 = vector.load %arg2[%c0_1, %c0_2] : memref<512x128xbf16, #tpu.memory_space<vmem>>, vector<512x128xbf16>
    %cst_3 = arith.constant dense<0.000000e+00> : vector<8x128xf32>
    %4 = tpu.matmul %2, %3, %cst_3 {dimension_numbers = #tpu.dot_dimension_numbers<[1], [0], [0], [1], [0, 0, 1, 1], [], []>} : vector<8x512xbf16>, vector<512x128xbf16>, vector<8x128xf32> -> vector<8x128xf32>
    %c0_4 = arith.constant 0 : index
    %c0_5 = arith.constant 0 : index
    %5 = vector.load %arg3[%c0_4, %c0_5] : memref<1x128xf32, #tpu.memory_space<vmem>>, vector<1x128xf32>
    %6 = vector.broadcast %5 : vector<1x128xf32> to vector<8x128xf32>
    %7 = arith.addf %4, %6 : vector<8x128xf32>
    %cst_6 = arith.constant 0.000000e+00 : f32
    %8 = vector.broadcast %cst_6 : f32 to vector<8x128xf32>
    %9 = arith.maximumf %7, %8 : vector<8x128xf32>
    %10 = arith.truncf %9 : vector<8x128xf32> to vector<8x128xbf16>
    %c0_7 = arith.constant 0 : index
    %c0_8 = arith.constant 0 : index
    %11 = vector.load %arg4[%c0_7, %c0_8] : memref<128x10xbf16, #tpu.memory_space<vmem>>, vector<128x10xbf16>
    %cst_9 = arith.constant dense<0.000000e+00> : vector<8x10xf32>
    %12 = tpu.matmul %10, %11, %cst_9 {dimension_numbers = #tpu.dot_dimension_numbers<[1], [0], [0], [1], [0, 0, 1, 1], [], []>} : vector<8x128xbf16>, vector<128x10xbf16>, vector<8x10xf32> -> vector<8x10xf32>
    %c0_10 = arith.constant 0 : index
    %c0_11 = arith.constant 0 : index
    %13 = vector.load %arg5[%c0_10, %c0_11] : memref<1x10xf32, #tpu.memory_space<vmem>>, vector<1x10xf32>
    %14 = vector.broadcast %13 : vector<1x10xf32> to vector<8x10xf32>
    %15 = arith.addf %12, %14 : vector<8x10xf32>
    %cst_12 = arith.constant dense<0xFF800000> : vector<8xf32>
    %16 = vector.multi_reduction <maximumf>, %15, %cst_12 [1] : vector<8x10xf32> to vector<8xf32>
    %17 = vector.shape_cast %16 : vector<8xf32> to vector<8x1xf32>
    %18 = vector.broadcast %17 : vector<8x1xf32> to vector<8x10xf32>
    %19 = arith.subf %15, %18 : vector<8x10xf32>
    %20 = math.exp %19 : vector<8x10xf32>
    %cst_13 = arith.constant dense<0.000000e+00> : vector<8xf32>
    %21 = vector.multi_reduction <add>, %20, %cst_13 [1] : vector<8x10xf32> to vector<8xf32>
    %22 = vector.shape_cast %21 : vector<8xf32> to vector<8x1xf32>
    %23 = tpu.reciprocal %22 {approx = true} : vector<8x1xf32> -> vector<8x1xf32>
    %24 = vector.broadcast %23 : vector<8x1xf32> to vector<8x10xf32>
    %25 = arith.mulf %20, %24 : vector<8x10xf32>
    %c0_14 = arith.constant 0 : index
    %c0_15 = arith.constant 0 : index
    %26 = vector.load %arg6[%c0_14, %c0_15] : memref<8x10xf32, #tpu.memory_space<vmem>>, vector<8x10xf32>
    tpu.vector_store %arg6[%c0_14, %c0_15], %25 {strides = array<i32>} : memref<8x10xf32, #tpu.memory_space<vmem>>, vector<8x10xf32>,
    return
  }
  func.func @transform_0(%arg0: i32) -> (i32, i32) {
    %c0_i32 = arith.constant 0 : i32
    %c0_i32_0 = arith.constant 0 : i32
    return %arg0, %c0_i32 : i32, i32
  }
  func.func @transform_1(%arg0: i32) -> (i32, i32) {
    %c0_i32 = arith.constant 0 : i32
    %c0_i32_0 = arith.constant 0 : i32
    %c0_i32_1 = arith.constant 0 : i32
    return %c0_i32, %c0_i32_0 : i32, i32
  }
  func.func @transform_2(%arg0: i32) -> (i32, i32) {
    %c0_i32 = arith.constant 0 : i32
    %c0_i32_0 = arith.constant 0 : i32
    %c0_i32_1 = arith.constant 0 : i32
    return %c0_i32, %c0_i32_0 : i32, i32
  }
  func.func @transform_3(%arg0: i32) -> (i32, i32) {
    %c0_i32 = arith.constant 0 : i32
    %c0_i32_0 = arith.constant 0 : i32
    %c0_i32_1 = arith.constant 0 : i32
    return %c0_i32, %c0_i32_0 : i32, i32
  }
  func.func @transform_4(%arg0: i32) -> (i32, i32) {
    %c0_i32 = arith.constant 0 : i32
    %c0_i32_0 = arith.constant 0 : i32
    %c0_i32_1 = arith.constant 0 : i32
    return %c0_i32, %c0_i32_0 : i32, i32
  }
  func.func @transform_5(%arg0: i32) -> (i32, i32) {
    %c0_i32 = arith.constant 0 : i32
    %c0_i32_0 = arith.constant 0 : i32
    return %arg0, %c0_i32 : i32, i32
  }
}

</mosaic_0001>

<llo_original>
// kernel: classifier_forward.1
$region0: #{classifier_forward.1}
  #allocation0 [shape = 'u32[]', space=smem, size = 0x4, offset = 0x4, fixed_abs, tag = 'smem constant byte address 0x4 - core index']
  #allocation1 [shape = 'u32[144,128]{1,0:T(1,128)}', space=vmem, size = 0x12000, scoped, tag = 'internal scratch']
  %s0 = inlined_call_operand.vmem [shape: bf16[8,512], index: 0, kind: input, shape index: {}]
  %s1 = inlined_call_operand.vmem [shape: bf16[512,128], index: 1, kind: input, shape index: {}]
  %s2 = inlined_call_operand.vmem [shape: f32[1,128], index: 2, kind: input, shape index: {}]
  %s3 = inlined_call_operand.vmem [shape: bf16[128,10], index: 3, kind: input, shape index: {}]
  %s4 = inlined_call_operand.vmem [shape: f32[1,10], index: 4, kind: input, shape index: {}]
  %s5 = inlined_call_operand.hbm [shape: f32[8,10], index: 5, kind: output, shape index: {}]
  %s6 = sld [smem:[#allocation0]]
  $region30: #{classifier_forward.1} parent=0
    _
  %s8 = ssub.s32 1, %s6
  %s9 = scalar_select 0, %s8, %s6
  $region1: #{classifier_forward.1} parent=0
    #allocation2 [shape = 'u8[4096]{0}', space=vmem, size = 0x1000, scoped, tag = 'output window, operand 0, single buffered']
    #allocation3 [shape = 's32[1]{0}', space=sflag, size = 0x4, scoped, tag = 'scoped memory for classifier_forward.1']
    %10 = vsyncpa [#allocation3], 0
    // Predicated region
    $region2: #{classifier_forward.1} parent=1 // pred_check
      _
    $region3: #{classifier_forward.1} parent=1 // pred_check_branch
      %12 = sbr.rel (0) target = $region5
    $region4: #{classifier_forward.1} parent=1 // pred_region
      _
    $region5: #{classifier_forward.1} parent=1 // pred_fallthru
      _
    // Predicated region
    $region6: #{classifier_forward.1} parent=1 // pred_check
      _
    $region7: #{classifier_forward.1} parent=1 // pred_check_branch
      %14 = sbr.rel (0) target = $region9
    $region8: #{classifier_forward.1} parent=1 // pred_region
      _
    $region9: #{classifier_forward.1} parent=1 // pred_fallthru
      _
    // Predicated region
    $region10: #{classifier_forward.1} parent=1 // pred_check
      _
    $region11: #{classifier_forward.1} parent=1 // pred_check_branch
      %16 = sbr.rel (0) target = $region13
    $region12: #{classifier_forward.1} parent=1 // pred_region
      _
    $region13: #{classifier_forward.1} parent=1 // pred_fallthru
      _
    // Predicated region
    $region14: #{classifier_forward.1} parent=1 // pred_check
      _
    $region15: #{classifier_forward.1} parent=1 // pred_check_branch
      %18 = sbr.rel (0) target = $region17
    $region16: #{classifier_forward.1} parent=1 // pred_region
      _
    $region17: #{classifier_forward.1} parent=1 // pred_fallthru
      _
    // Predicated region
    $region18: #{classifier_forward.1} parent=1 // pred_check
      _
    $region19: #{classifier_forward.1} parent=1 // pred_check_branch
      %20 = sbr.rel (0) target = $region21
    $region20: #{classifier_forward.1} parent=1 // pred_region
      _
    $region21: #{classifier_forward.1} parent=1 // pred_fallthru
      _
    %v22 = vld [vmem:[%s0] sm:$0xff]
    %v23 = vld [vmem:[%s0 + $0x8] sm:$0xff]
    %v24 = vmax.bf16 %v22, 0
    %v25 = vmax.bf16 %v23, 0
    %v26 = vld [vmem:[%s1] sm:$0xf]
    %v27 = vld [vmem:[%s1 + $0x4] sm:$0xf]
    %v28 = vld [vmem:[%s1 + $0x8] sm:$0xf]
    %v29 = vld [vmem:[%s1 + $0xc] sm:$0xf]
    %v30 = vld [vmem:[%s1 + $0x10] sm:$0xf]
    %v31 = vld [vmem:[%s1 + $0x14] sm:$0xf]
    %v32 = vld [vmem:[%s1 + $0x18] sm:$0xf]
    %v33 = vld [vmem:[%s1 + $0x1c] sm:$0xf]
    %v34 = vld [vmem:[%s1 + $0x20] sm:$0xf]
    %v35 = vld [vmem:[%s1 + $0x24] sm:$0xf]
    %v36 = vld [vmem:[%s1 + $0x28] sm:$0xf]
    %v37 = vld [vmem:[%s1 + $0x2c] sm:$0xf]
    %v38 = vld [vmem:[%s1 + $0x30] sm:$0xf]
    %v39 = vld [vmem:[%s1 + $0x34] sm:$0xf]
    %v40 = vld [vmem:[%s1 + $0x38] sm:$0xf]
    %v41 = vld [vmem:[%s1 + $0x3c] sm:$0xf]
    %v42 = vld [vmem:[%s1 + $0x40] sm:$0xf]
    %v43 = vld [vmem:[%s1 + $0x44] sm:$0xf]
    %v44 = vld [vmem:[%s1 + $0x48] sm:$0xf]
    %v45 = vld [vmem:[%s1 + $0x4c] sm:$0xf]
    %v46 = vld [vmem:[%s1 + $0x50] sm:$0xf]
    %v47 = vld [vmem:[%s1 + $0x54] sm:$0xf]
    %v48 = vld [vmem:[%s1 + $0x58] sm:$0xf]
    %v49 = vld [vmem:[%s1 + $0x5c] sm:$0xf]
    %v50 = vld [vmem:[%s1 + $0x60] sm:$0xf]
    %v51 = vld [vmem:[%s1 + $0x64] sm:$0xf]
    %v52 = vld [vmem:[%s1 + $0x68] sm:$0xf]
    %v53 = vld [vmem:[%s1 + $0x6c] sm:$0xf]
    %v54 = vld [vmem:[%s1 + $0x70] sm:$0xf]
    %v55 = vld [vmem:[%s1 + $0x74] sm:$0xf]
    %v56 = vld [vmem:[%s1 + $0x78] sm:$0xf]
    %v57 = vld [vmem:[%s1 + $0x7c] sm:$0xf]
    %v58 = vld [vmem:[%s1 + $0x80] sm:$0xf]
    %v59 = vld [vmem:[%s1 + $0x84] sm:$0xf]
    %v60 = vld [vmem:[%s1 + $0x88] sm:$0xf]
    %v61 = vld [vmem:[%s1 + $0x8c] sm:$0xf]
    %v62 = vld [vmem:[%s1 + $0x90] sm:$0xf]
    %v63 = vld [vmem:[%s1 + $0x94] sm:$0xf]
    %v64 = vld [vmem:[%s1 + $0x98] sm:$0xf]
    %v65 = vld [vmem:[%s1 + $0x9c] sm:$0xf]
    %v66 = vld [vmem:[%s1 + $0xa0] sm:$0xf]
    %v67 = vld [vmem:[%s1 + $0xa4] sm:$0xf]
    %v68 = vld [vmem:[%s1 + $0xa8] sm:$0xf]
    %v69 = vld [vmem:[%s1 + $0xac] sm:$0xf]
    %v70 = vld [vmem:[%s1 + $0xb0] sm:$0xf]
    %v71 = vld [vmem:[%s1 + $0xb4] sm:$0xf]
    %v72 = vld [vmem:[%s1 + $0xb8] sm:$0xf]
    %v73 = vld [vmem:[%s1 + $0xbc] sm:$0xf]
    %v74 = vld [vmem:[%s1 + $0xc0] sm:$0xf]
    %v75 = vld [vmem:[%s1 + $0xc4] sm:$0xf]
    %v76 = vld [vmem:[%s1 + $0xc8] sm:$0xf]
    %v77 = vld [vmem:[%s1 + $0xcc] sm:$0xf]
    %v78 = vld [vmem:[%s1 + $0xd0] sm:$0xf]
    %v79 = vld [vmem:[%s1 + $0xd4] sm:$0xf]
    %v80 = vld [vmem:[%s1 + $0xd8] sm:$0xf]
    %v81 = vld [vmem:[%s1 + $0xdc] sm:$0xf]
    %v82 = vld [vmem:[%s1 + $0xe0] sm:$0xf]
    %v83 = vld [vmem:[%s1 + $0xe4] sm:$0xf]
    %v84 = vld [vmem:[%s1 + $0xe8] sm:$0xf]
    %v85 = vld [vmem:[%s1 + $0xec] sm:$0xf]
    %v86 = vld [vmem:[%s1 + $0xf0] sm:$0xf]
    %v87 = vld [vmem:[%s1 + $0xf4] sm:$0xf]
    %v88 = vld [vmem:[%s1 + $0xf8] sm:$0xf]
    %v89 = vld [vmem:[%s1 + $0xfc] sm:$0xf]
    %v90 = vld [vmem:[%s2] sm:$0x1]
    %v92 = vlaneseq
    %v93 = vshrl.u32 %v92, 7
    %v94 = vsub.s32 0, %v93
    %v95 = vrot.slane %v90, %v94
    %v99 = vunpack.c.l.b16 %v24
    %v100 = vunpack.c.h.b16 %v24
    %v101 = vunpack.c.l.b16 %v25
    %v102 = vunpack.c.h.b16 %v25
    %v103 = vpack.c.b16 %v99, %v99
    %v104 = vpack.c.b16 %v100, %v100
    %v105 = vpack.c.b16 %v101, %v101
    %v106 = vpack.c.b16 %v102, %v102
    %v175 = vunpack.c.l.b16 %v26
    %v176 = vunpack.c.l.b16 %v27
    %v177 = vunpack.c.l.b16 %v28
    %v178 = vunpack.c.l.b16 %v29
    %v179 = vunpack.c.l.b16 %v30
    %v180 = vunpack.c.l.b16 %v31
    %v181 = vunpack.c.l.b16 %v32
    %v182 = vunpack.c.l.b16 %v33
    %v183 = vunpack.c.l.b16 %v34
    %v184 = vunpack.c.l.b16 %v35
    %v185 = vunpack.c.l.b16 %v36
    %v186 = vunpack.c.l.b16 %v37
    %v187 = vunpack.c.l.b16 %v38
    %v188 = vunpack.c.l.b16 %v39
    %v189 = vunpack.c.l.b16 %v40
    %v190 = vunpack.c.l.b16 %v41
    %v191 = vunpack.c.l.b16 %v42
    %v192 = vunpack.c.l.b16 %v43
    %v193 = vunpack.c.l.b16 %v44
    %v194 = vunpack.c.l.b16 %v45
    %v195 = vunpack.c.l.b16 %v46
    %v196 = vunpack.c.l.b16 %v47
    %v197 = vunpack.c.l.b16 %v48
    %v198 = vunpack.c.l.b16 %v49
    %v199 = vunpack.c.l.b16 %v50
    %v200 = vunpack.c.l.b16 %v51
    %v201 = vunpack.c.l.b16 %v52
    %v202 = vunpack.c.l.b16 %v53
    %v203 = vunpack.c.l.b16 %v54
    %v204 = vunpack.c.l.b16 %v55
    %v205 = vunpack.c.l.b16 %v56
    %v206 = vunpack.c.l.b16 %v57
    %v207 = vunpack.c.l.b16 %v58
    %v208 = vunpack.c.l.b16 %v59
    %v209 = vunpack.c.l.b16 %v60
    %v210 = vunpack.c.l.b16 %v61
    %v211 = vunpack.c.l.b16 %v62
    %v212 = vunpack.c.l.b16 %v63
    %v213 = vunpack.c.l.b16 %v64
    %v214 = vunpack.c.l.b16 %v65
    %v215 = vunpack.c.l.b16 %v66
    %v216 = vunpack.c.l.b16 %v67
    %v217 = vunpack.c.l.b16 %v68
    %v218 = vunpack.c.l.b16 %v69
    %v219 = vunpack.c.l.b16 %v70
    %v220 = vunpack.c.l.b16 %v71
    %v221 = vunpack.c.l.b16 %v72
    %v222 = vunpack.c.l.b16 %v73
    %v223 = vunpack.c.l.b16 %v74
    %v224 = vunpack.c.l.b16 %v75
    %v225 = vunpack.c.l.b16 %v76
    %v226 = vunpack.c.l.b16 %v77
    %v227 = vunpack.c.l.b16 %v78
    %v228 = vunpack.c.l.b16 %v79
    %v229 = vunpack.c.l.b16 %v80
    %v230 = vunpack.c.l.b16 %v81
    %v231 = vunpack.c.l.b16 %v82
    %v232 = vunpack.c.l.b16 %v83
    %v233 = vunpack.c.l.b16 %v84
    %v234 = vunpack.c.l.b16 %v85
    %v235 = vunpack.c.l.b16 %v86
    %v236 = vunpack.c.l.b16 %v87
    %v237 = vunpack.c.l.b16 %v88
    %v238 = vunpack.c.l.b16 %v89
    %v239 = vpack.c.b16 %v176, %v175
    %v240 = vpack.c.b16 %v178, %v177
    %v241 = vpack.c.b16 %v180, %v179
    %v242 = vpack.c.b16 %v182, %v181
    %v243 = vpack.c.b16 %v184, %v183
    %v244 = vpack.c.b16 %v186, %v185
    %v245 = vpack.c.b16 %v188, %v187
    %v246 = vpack.c.b16 %v190, %v189
    %v247 = vpack.c.b16 %v192, %v191
    %v248 = vpack.c.b16 %v194, %v193
    %v249 = vpack.c.b16 %v196, %v195
    %v250 = vpack.c.b16 %v198, %v197
    %v251 = vpack.c.b16 %v200, %v199
    %v252 = vpack.c.b16 %v202, %v201
    %v253 = vpack.c.b16 %v204, %v203
    %v254 = vpack.c.b16 %v206, %v205
    %v255 = vpack.c.b16 %v208, %v207
    %v256 = vpack.c.b16 %v210, %v209
    %v257 = vpack.c.b16 %v212, %v211
    %v258 = vpack.c.b16 %v214, %v213
    %v259 = vpack.c.b16 %v216, %v215
    %v260 = vpack.c.b16 %v218, %v217
    %v261 = vpack.c.b16 %v220, %v219
    %v262 = vpack.c.b16 %v222, %v221
    %v263 = vpack.c.b16 %v224, %v223
    %v264 = vpack.c.b16 %v226, %v225
    %v265 = vpack.c.b16 %v228, %v227
    %v266 = vpack.c.b16 %v230, %v229
    %v267 = vpack.c.b16 %v232, %v231
    %v268 = vpack.c.b16 %v234, %v233
    %v269 = vpack.c.b16 %v236, %v235
    %v270 = vpack.c.b16 %v238, %v237
    %303 = vmatprep.subr.bf16.mxu0 0
    %304 = vmatpush1.bf16.msra.mxu0 %v246
    %305 = vmatprep.subr.bf16.mxu0 0
    %306 = vmatpush1.bf16.msra.mxu0 %v245
    %307 = vmatprep.subr.bf16.mxu0 0
    %308 = vmatpush1.bf16.msra.mxu0 %v244
    %309 = vmatprep.subr.bf16.mxu0 0
    %310 = vmatpush1.bf16.msra.mxu0 %v243
    %311 = vmatprep.subr.bf16.mxu0 0
    %312 = vmatpush1.bf16.msra.mxu0 %v242
    %313 = vmatprep.subr.bf16.mxu0 0
    %314 = vmatpush1.bf16.msra.mxu0 %v241
    %315 = vmatprep.subr.bf16.mxu0 0
    %316 = vmatpush1.bf16.msra.mxu0 %v240
    %317 = vmatprep.subr.bf16.mxu0 0
    %318 = vmatpush1.bf16.msra.mxu0 %v239
    %319 = vmatprep.subr.bf16.mxu0 0
    %320 = vmatpush2.bf16.msra.mxu0 %v254
    %321 = vmatprep.subr.bf16.mxu0 0
    %322 = vmatpush2.bf16.msra.mxu0 %v253
    %323 = vmatprep.subr.bf16.mxu0 0
    %324 = vmatpush2.bf16.msra.mxu0 %v252
    %325 = vmatprep.subr.bf16.mxu0 0
    %326 = vmatpush2.bf16.msra.mxu0 %v251
    %327 = vmatprep.subr.bf16.mxu0 0
    %328 = vmatpush2.bf16.msra.mxu0 %v250
    %329 = vmatprep.subr.bf16.mxu0 0
    %330 = vmatpush2.bf16.msra.mxu0 %v249
    %331 = vmatprep.subr.bf16.mxu0 0
    %332 = vmatpush2.bf16.msra.mxu0 %v248
    %333 = vmatprep.subr.bf16.mxu0 0
    %334 = vmatpush2.bf16.msra.mxu0 %v247
    %335 = vmatprep.mubr.bf16.mxu0 %v104
    %336 = vmatmul.mubr.bf16.gmra.mxu0 %v103
    %v337 = vpop.f32.mrf.mxu0
    %v338 = vadd.f32 %v95, %v337
    %v339 = vpop.f32.mrf.mxu0
    %v340 = vpop.f32.mrf.mxu0
    %v341 = vpop.f32.mrf.mxu0
    %342 = vdwg.mxu0
    %343 = vmatprep.subr.bf16.mxu0 0
    %344 = vmatpush1.bf16.msra.mxu0 %v262
    %345 = vmatprep.subr.bf16.mxu0 0
    %346 = vmatpush1.bf16.msra.mxu0 %v261
    %347 = vmatprep.subr.bf16.mxu0 0
    %348 = vmatpush1.bf16.msra.mxu0 %v260
    %349 = vmatprep.subr.bf16.mxu0 0
    %350 = vmatpush1.bf16.msra.mxu0 %v259
    %351 = vmatprep.subr.bf16.mxu0 0
    %352 = vmatpush1.bf16.msra.mxu0 %v258
    %353 = vmatprep.subr.bf16.mxu0 0
    %354 = vmatpush1.bf16.msra.mxu0 %v257
    %355 = vmatprep.subr.bf16.mxu0 0
    %356 = vmatpush1.bf16.msra.mxu0 %v256
    %357 = vmatprep.subr.bf16.mxu0 0
    %358 = vmatpush1.bf16.msra.mxu0 %v255
    %359 = vmatprep.subr.bf16.mxu0 0
    %360 = vmatpush2.bf16.msra.mxu0 %v270
    %361 = vmatprep.subr.bf16.mxu0 0
    %362 = vmatpush2.bf16.msra.mxu0 %v269
    %363 = vmatprep.subr.bf16.mxu0 0
    %364 = vmatpush2.bf16.msra.mxu0 %v268
    %365 = vmatprep.subr.bf16.mxu0 0
    %366 = vmatpush2.bf16.msra.mxu0 %v267
    %367 = vmatprep.subr.bf16.mxu0 0
    %368 = vmatpush2.bf16.msra.mxu0 %v266
    %369 = vmatprep.subr.bf16.mxu0 0
    %370 = vmatpush2.bf16.msra.mxu0 %v265
    %371 = vmatprep.subr.bf16.mxu0 0
    %372 = vmatpush2.bf16.msra.mxu0 %v264
    %373 = vmatprep.subr.bf16.mxu0 0
    %374 = vmatpush2.bf16.msra.mxu0 %v263
    %375 = vmatprep.mubr.bf16.mxu0 %v106
    %376 = vmatmul.mubr.bf16.gmra.mxu0 %v105
    %v377 = vpop.f32.mrf.mxu0
    %v378 = vadd.f32 %v338, %v377
    %v379 = vpop.f32.mrf.mxu0
    %v380 = vpop.f32.mrf.mxu0
    %v381 = vpop.f32.mrf.mxu0
    %382 = vdwg.mxu0
    %v383 = vmax.f32 %v378, 0.0
    %v384 = vpack.c.bf16 %v383, %v383
    %v385 = vld [vmem:[%s3] sm:$0xf]
    %v386 = vld [vmem:[%s3 + $0x4] sm:$0xf]
    %v387 = vld [vmem:[%s3 + $0x8] sm:$0xf]
    %v388 = vld [vmem:[%s3 + $0xc] sm:$0xf]
    %v389 = vld [vmem:[%s3 + $0x10] sm:$0xf]
    %v390 = vld [vmem:[%s3 + $0x14] sm:$0xf]
    %v391 = vld [vmem:[%s3 + $0x18] sm:$0xf]
    %v392 = vld [vmem:[%s3 + $0x1c] sm:$0xf]
    %v393 = vld [vmem:[%s3 + $0x20] sm:$0xf]
    %v394 = vld [vmem:[%s3 + $0x24] sm:$0xf]
    %v395 = vld [vmem:[%s3 + $0x28] sm:$0xf]
    %v396 = vld [vmem:[%s3 + $0x2c] sm:$0xf]
    %v397 = vld [vmem:[%s3 + $0x30] sm:$0xf]
    %v398 = vld [vmem:[%s3 + $0x34] sm:$0xf]
    %v399 = vld [vmem:[%s3 + $0x38] sm:$0xf]
    %v400 = vld [vmem:[%s3 + $0x3c] sm:$0xf]
    %v401 = vld [vmem:[%s4] sm:$0x1]
    %v403 = vlaneseq
    %v404 = vshrl.u32 %v403, 7
    %v405 = vsub.s32 0, %v404
    %v406 = vrot.slane %v401, %v405
    %v424 = vunpack.c.l.b16 %v385
    %v425 = vunpack.c.l.b16 %v386
    %v426 = vunpack.c.l.b16 %v387
    %v427 = vunpack.c.l.b16 %v388
    %v428 = vunpack.c.l.b16 %v389
    %v429 = vunpack.c.l.b16 %v390
    %v430 = vunpack.c.l.b16 %v391
    %v431 = vunpack.c.l.b16 %v392
    %v432 = vunpack.c.l.b16 %v393
    %v433 = vunpack.c.l.b16 %v394
    %v434 = vunpack.c.l.b16 %v395
    %v435 = vunpack.c.l.b16 %v396
    %v436 = vunpack.c.l.b16 %v397
    %v437 = vunpack.c.l.b16 %v398
    %v438 = vunpack.c.l.b16 %v399
    %v439 = vunpack.c.l.b16 %v400
    %v440 = vpack.c.b16 %v425, %v424
    %v441 = vpack.c.b16 %v427, %v426
    %v442 = vpack.c.b16 %v429, %v428
    %v443 = vpack.c.b16 %v431, %v430
    %v444 = vpack.c.b16 %v433, %v432
    %v445 = vpack.c.b16 %v435, %v434
    %v446 = vpack.c.b16 %v437, %v436
    %v447 = vpack.c.b16 %v439, %v438
    %456 = vmatprep.subr.bf16.mxu0 0
    %457 = vmatpush1.bf16.msra.mxu0 %v447
    %458 = vmatprep.subr.bf16.mxu0 0
    %459 = vmatpush1.bf16.msra.mxu0 %v446
    %460 = vmatprep.subr.bf16.mxu0 0
    %461 = vmatpush1.bf16.msra.mxu0 %v445
    %462 = vmatprep.subr.bf16.mxu0 0
    %463 = vmatpush1.bf16.msra.mxu0 %v444
    %464 = vmatprep.subr.bf16.mxu0 0
    %465 = vmatpush1.bf16.msra.mxu0 %v443
    %466 = vmatprep.subr.bf16.mxu0 0
    %467 = vmatpush1.bf16.msra.mxu0 %v442
    %468 = vmatprep.subr.bf16.mxu0 0
    %469 = vmatpush1.bf16.msra.mxu0 %v441
    %470 = vmatprep.subr.bf16.mxu0 0
    %471 = vmatpush1.bf16.msra.mxu0 %v440
    %472 = vmatprep.subr.bf16.mxu0 0
    %473 = vmatpush2.bf16.msra.mxu0 0
    %474 = vmatprep.subr.bf16.mxu0 0
    %475 = vmatpush2.bf16.msra.mxu0 0
    %476 = vmatprep.subr.bf16.mxu0 0
    %477 = vmatpush2.bf16.msra.mxu0 0
    %478 = vmatprep.subr.bf16.mxu0 0
    %479 = vmatpush2.bf16.msra.mxu0 0
    %480 = vmatprep.subr.bf16.mxu0 0
    %481 = vmatpush2.bf16.msra.mxu0 0
    %482 = vmatprep.subr.bf16.mxu0 0
    %483 = vmatpush2.bf16.msra.mxu0 0
    %484 = vmatprep.subr.bf16.mxu0 0
    %485 = vmatpush2.bf16.msra.mxu0 0
    %486 = vmatprep.subr.bf16.mxu0 0
    %487 = vmatpush2.bf16.msra.mxu0 0
    %488 = vmatprep.mubr.bf16.mxu0 0
    %489 = vmatmul.mubr.bf16.gmra.mxu0 %v384
    %v490 = vpop.f32.mrf.mxu0
    %v491 = vadd.f32 %v406, %v490
    %v492 = vpop.f32.mrf.mxu0
    %v493 = vpop.f32.mrf.mxu0
    %v494 = vpop.f32.mrf.mxu0
    %495 = vdwg.mxu0
    %vm496 = vcmask 80896
    %v497 = vsel %vm496, %v491, -inf
    %498 = vmax.xlane.f32.xlu0 %v497
    %v499 = vpop.xlane.xlu0 %498
    %v500 = vsub.f32 %v491, %v499
    %v501 = vmul.f32 %v500, 1.442695
    %v502 = vpow.pop %v501
    %v503 = vsel %vm496, %v502, 0.0
    %504 = vadd.xlane.f32.xlu0 %v503
    %v505 = vpop.xlane.xlu0 %504
    %v506 = vrcp.pop %v505
    %v507 = vmul.f32 %v502, %v506
    %508 = vst.msk [vmem:[#allocation2] sm:$0xff] %vm496, %v507
    // Predicated region
    $region22: #{classifier_forward.1} parent=1 // pred_check
      _
    $region23: #{classifier_forward.1} parent=1 // pred_check_branch
      %510 = sbr.rel (0) target = $region25
    $region24: #{classifier_forward.1} parent=1 // pred_region
      %s512 = ssub.s32 128, 128
      %513 = vsyncadd [#allocation3], %s512
      %s515 = sshll.u32 [#allocation2], 4
      %s516 = int_to_ptr.vmem [resolvable:$true] %s515
      %518 = dma.vmem_to_hbm [thread:$0]  %s516, 128, %s5, [#allocation3]
    $region25: #{classifier_forward.1} parent=1 // pred_fallthru
      _
    // Predicated region
    $region26: #{classifier_forward.1} parent=1 // pred_check
      _
    $region27: #{classifier_forward.1} parent=1 // pred_check_branch
      %520 = sbr.rel (0) target = $region29
    $region28: #{classifier_forward.1} parent=1 // pred_region
      %521 = dma.done [#allocation3], 128
    $region29: #{classifier_forward.1} parent=1 // pred_fallthru
      _
    %522 = vsyncpa [#allocation3], 1

</llo_original>
